<compile_context>
chip_gen: v7x
topology: tpu7x:2x2x1
jax: 0.10.0
libtpu: 0.0.40
codegen_flags: <defaults>
</compile_context>

<pallas_src>
import functools
import math

import jax
import jax.numpy as jnp
from jax import lax
from jax.experimental import pallas as pl
from jax.experimental.pallas import tpu as pltpu


def _round_up(a, b):
    return -(-a // b) * b


def _blur_kernel(x_ref, o_ref, *, h, planes, chunk_rows, nchunks):
    """Fused separable 3x3 blur on a block of `planes` stacked (h, W) planes.

    x_ref / o_ref: (planes * h, W); planes are stacked along the sublane axis.
    """
    w = o_ref.shape[-1]
    scale = jnp.float32(1.0 / 16.0)

    # Constant edge masks, hoisted out of the loops (shared by every chunk).
    col = lax.broadcasted_iota(jnp.int32, (chunk_rows, w), 1)
    has_left = col > 0
    has_right = col < (w - 1)
    srow = lax.broadcasted_iota(jnp.int32, (chunk_rows, w), 0)
    is_first = srow == 0
    is_last = srow == (chunk_rows - 1)
    col1 = lax.broadcasted_iota(jnp.int32, (1, w), 1)
    has_left1 = col1 > 0
    has_right1 = col1 < (w - 1)

    def hpass(v, hl, hr):
        # Horizontal [1, 2, 1] with zero padding along the lane axis.
        left = jnp.where(hl, pltpu.roll(v, shift=1, axis=1), 0.0)
        right = jnp.where(hr, pltpu.roll(v, shift=w - 1, axis=1), 0.0)
        return (v + v) + left + right

    def chunk_body(plane, ci, carry):
        p0 = plane * h                                        # first row of plane
        c0 = jnp.minimum(ci * chunk_rows, h - chunk_rows)     # chunk start in plane
        r0 = p0 + c0
        if h % 8 == 0 and chunk_rows % 8 == 0:
            r0 = pl.multiple_of(r0, 8)

        xs = x_ref[pl.ds(r0, chunk_rows), :].astype(jnp.float32)
        hs = hpass(xs, has_left, has_right)

        # Vertical neighbours inside the chunk come from sublane rolls of hs;
        # the two chunk-boundary rows are patched from 1-row halo reads (still
        # inside this plane / this VMEM block), or zero at the plane border.
        up = pltpu.roll(hs, shift=1, axis=0)
        dn = pltpu.roll(hs, shift=chunk_rows - 1, axis=0)
        if nchunks > 1:
            up_row = x_ref[pl.ds(jnp.maximum(r0 - 1, p0), 1), :].astype(jnp.float32)
            dn_row = x_ref[
                pl.ds(jnp.minimum(r0 + chunk_rows, p0 + h - 1), 1), :
            ].astype(jnp.float32)
            h_up = jnp.where(c0 > 0, hpass(up_row, has_left1, has_right1), 0.0)
            h_dn = jnp.where(c0 + chunk_rows < h,
                             hpass(dn_row, has_left1, has_right1), 0.0)
            up = jnp.where(is_first, jnp.broadcast_to(h_up, (chunk_rows, w)), up)
            dn = jnp.where(is_last, jnp.broadcast_to(h_dn, (chunk_rows, w)), dn)
        else:
            up = jnp.where(is_first, 0.0, up)
            dn = jnp.where(is_last, 0.0, dn)

        ys = (((hs + hs) + up + dn) * scale).astype(o_ref.dtype)
        o_ref[pl.ds(r0, chunk_rows), :] = ys
        return carry

    def plane_body(plane, carry):
        if nchunks == 1:
            return chunk_body(plane, 0, carry)
        return lax.fori_loop(0, nchunks, functools.partial(chunk_body, plane), carry)

    if planes == 1:
        plane_body(0, 0)
    else:
        lax.fori_loop(0, planes, plane_body, 0)


def _choose_blocking(nc, h, w):
    """Pick (planes_per_block, chunk_rows, nchunks) for the (NC*H, W) view."""
    lane_bytes = _round_up(w, 128) * 4  # padded f32 bytes per image row
    # Row-chunk processed per inner step: ~128 KiB of live f32 value (a few
    # dozen vregs) so rolled/shifted temporaries never spill.
    budget_rows = max(8, ((128 * 1024) // lane_bytes) // 8 * 8)
    chunk_rows = min(h, budget_rows)
    nchunks = pl.cdiv(h, chunk_rows)

    # Planes per grid block: ~4 MiB target (good HBM efficiency on v5e/v6e;
    # 2x(in)+2x(out) double-buffering stays ~16 MiB, safe on v7x's 64 MiB).
    # Keep the block row count a multiple of 8 for the BlockSpec constraint.
    align = 8 // math.gcd(h, 8)
    planes = max(1, (4 * 1024 * 1024) // (h * lane_bytes))
    # Keep at least ~4 grid steps when enough planes exist (dual-TC sharding
    # on v7x + iterations for the pipeline to overlap DMA with compute).
    if nc >= 4 * align:
        planes = min(planes, max(align, nc // 4))
    planes = max(align, planes // align * align)
    planes = min(planes, _round_up(nc, align))
    return planes, chunk_rows, nchunks


def blur(x):
    """Depthwise 3x3 blur with padding=1, matching Blur.forward (NCHW)."""
    n, c, h, w = x.shape
    nc = n * c
    x2 = x.reshape(nc * h, w)  # free reshape: planes stacked on the sublane axis

    planes, chunk_rows, nchunks = _choose_blocking(nc, h, w)
    block_rows = planes * h
    grid = (pl.cdiv(nc * h, block_rows),)

    block_bytes = block_rows * _round_up(w, 128) * x.dtype.itemsize
    vmem_limit = int(min(96 * 2**20, max(32 * 2**20, 4 * block_bytes + 8 * 2**20)))

    kernel = functools.partial(
        _blur_kernel, h=h, planes=planes, chunk_rows=chunk_rows, nchunks=nchunks)

    out = pl.pallas_call(
        kernel,
        out_shape=jax.ShapeDtypeStruct((nc * h, w), x.dtype),
        grid=grid,
        in_specs=[pl.BlockSpec((block_rows, w), lambda i: (i, 0))],
        out_specs=pl.BlockSpec((block_rows, w), lambda i: (i, 0)),
        compiler_params=pltpu.CompilerParams(
            dimension_semantics=("parallel",),
            vmem_limit_bytes=vmem_limit,
        ),
    )(x2)
    return out.reshape(n, c, h, w)


def _blur_reference(x):
    """Pure-JAX reference using grouped conv (mirrors F.conv2d semantics)."""
    n, c, h, w = x.shape
    f = jnp.array([1.0, 2.0, 1.0], dtype=jnp.float32)
    k2d = (f[:, None] * f[None, :]) / 16.0
    kernel = jnp.tile(k2d[None, None, :, :], (c, 1, 1, 1))
    return jax.lax.conv_general_dilated(
        x.astype(jnp.float32), kernel,
        window_strides=(1, 1), padding=((1, 1), (1, 1)),
        dimension_numbers=("NCHW", "OIHW", "NCHW"),
        feature_group_count=c,
    ).astype(x.dtype)


if __name__ == "__main__":
    key = jax.random.PRNGKey(0)
    N, C, H, W = 2, 4, 16, 16
    x = jax.random.normal(key, (N, C, H, W), dtype=jnp.float32)

    y = blur(x)
    jax.block_until_ready(y)

    y_ref = _blur_reference(x)
    assert y.shape == (N, C, H, W)
    assert jnp.allclose(y, y_ref, atol=1e-5, rtol=1e-5)

    print("KERNEL_OK")
</pallas_src>

<mosaic_0001>
module attributes {stable_mosaic.version = 11 : i64} {
  func.func @_blur_kernel(%arg0: i32, %arg1: memref<32x16xf32, #tpu.memory_space<vmem>>, %arg2: memref<32x16xf32, #tpu.memory_space<vmem>>) attributes {dimension_semantics = [#tpu.dimension_semantics<parallel>], iteration_bounds = array<i64: 4>, scalar_prefetch = 0 : i64, scratch_operands = 0 : i64, tpu.core_type = #tpu.core_type<tc>, window_params = [{transform_indices = @transform_0, window_bounds = array<i64: 32, 16>}, {transform_indices = @transform_1, window_bounds = array<i64: 32, 16>}]} {
    %0 = tpu.iota {dimensions = array<i32: 1>} : vector<16x16xi32>
    %c0_i32 = arith.constant 0 : i32
    %1 = vector.broadcast %c0_i32 : i32 to vector<16x16xi32>
    %2 = arith.cmpi sgt, %0, %1 : vector<16x16xi32>
    %c15_i32 = arith.constant 15 : i32
    %3 = vector.broadcast %c15_i32 : i32 to vector<16x16xi32>
    %4 = arith.cmpi slt, %0, %3 : vector<16x16xi32>
    %5 = tpu.iota {dimensions = array<i32: 0>} : vector<16x16xi32>
    %c0_i32_0 = arith.constant 0 : i32
    %6 = vector.broadcast %c0_i32_0 : i32 to vector<16x16xi32>
    %7 = arith.cmpi eq, %5, %6 : vector<16x16xi32>
    %c15_i32_1 = arith.constant 15 : i32
    %8 = vector.broadcast %c15_i32_1 : i32 to vector<16x16xi32>
    %9 = arith.cmpi eq, %5, %8 : vector<16x16xi32>
    %cst = arith.constant 6.250000e-02 : f32
    %c0_i32_2 = arith.constant 0 : i32
    %c2_i32 = arith.constant 2 : i32
    %10 = arith.addi %c0_i32_2, %c2_i32 : i32
    %c1_i32 = arith.constant 1 : i32
    scf.for %arg3 = %c0_i32_2 to %10 step %c1_i32  : i32 {
      %c16_i32 = arith.constant 16 : i32
      %11 = arith.muli %arg3, %c16_i32 : i32
      %c0_i32_4 = arith.constant 0 : i32
      %c0_i32_5 = arith.constant 0 : i32
      %12 = arith.minsi %c0_i32_4, %c0_i32_5 : i32
      %13 = arith.addi %11, %12 : i32
      %14 = tpu.assume_multiple %13, 8 : i32
      %15 = arith.index_cast %14 : i32 to index
      %c0 = arith.constant 0 : index
      %16 = vector.load %arg1[%15, %c0] : memref<32x16xf32, #tpu.memory_space<vmem>>, vector<16x16xf32>
      %c1_i32_6 = arith.constant 1 : i32
      %17 = tpu.dynamic_rotate %16 by %c1_i32_6 dim 1 : vector<16x16xf32>, i32 -> vector<16x16xf32>
      %cst_7 = arith.constant 0.000000e+00 : f32
      %18 = vector.broadcast %cst_7 : f32 to vector<16x16xf32>
      %19 = arith.select %2, %17, %18 : vector<16x16xi1>, vector<16x16xf32>
      %c15_i32_8 = arith.constant 15 : i32
      %20 = tpu.dynamic_rotate %16 by %c15_i32_8 dim 1 : vector<16x16xf32>, i32 -> vector<16x16xf32>
      %cst_9 = arith.constant 0.000000e+00 : f32
      %21 = vector.broadcast %cst_9 : f32 to vector<16x16xf32>
      %22 = arith.select %4, %20, %21 : vector<16x16xi1>, vector<16x16xf32>
      %23 = arith.addf %16, %16 : vector<16x16xf32>
      %24 = arith.addf %23, %19 : vector<16x16xf32>
      %25 = arith.addf %24, %22 : vector<16x16xf32>
      %c1_i32_10 = arith.constant 1 : i32
      %26 = tpu.dynamic_rotate %25 by %c1_i32_10 dim 0 : vector<16x16xf32>, i32 -> vector<16x16xf32>
      %c15_i32_11 = arith.constant 15 : i32
      %27 = tpu.dynamic_rotate %25 by %c15_i32_11 dim 0 : vector<16x16xf32>, i32 -> vector<16x16xf32>
      %cst_12 = arith.constant 0.000000e+00 : f32
      %28 = vector.broadcast %cst_12 : f32 to vector<16x16xf32>
      %29 = arith.select %7, %28, %26 : vector<16x16xi1>, vector<16x16xf32>
      %cst_13 = arith.constant 0.000000e+00 : f32
      %30 = vector.broadcast %cst_13 : f32 to vector<16x16xf32>
      %31 = arith.select %9, %30, %27 : vector<16x16xi1>, vector<16x16xf32>
      %32 = arith.addf %25, %25 : vector<16x16xf32>
      %33 = arith.addf %32, %29 : vector<16x16xf32>
      %34 = arith.addf %33, %31 : vector<16x16xf32>
      %35 = vector.broadcast %cst : f32 to vector<16x16xf32>
      %36 = arith.mulf %34, %35 : vector<16x16xf32>
      %37 = arith.index_cast %14 : i32 to index
      %c0_14 = arith.constant 0 : index
      %38 = vector.load %arg2[%37, %c0_14] : memref<32x16xf32, #tpu.memory_space<vmem>>, vector<16x16xf32>
      tpu.vector_store %arg2[%37, %c0_14], %36 {strides = array<i32>} : memref<32x16xf32, #tpu.memory_space<vmem>>, vector<16x16xf32>,
    }
    %c2_i32_3 = arith.constant 2 : i32
    return
  }
  func.func @transform_0(%arg0: i32) -> (i32, i32) {
    %c0_i32 = arith.constant 0 : i32
    %c0_i32_0 = arith.constant 0 : i32
    return %arg0, %c0_i32 : i32, i32
  }
  func.func @transform_1(%arg0: i32) -> (i32, i32) {
    %c0_i32 = arith.constant 0 : i32
    %c0_i32_0 = arith.constant 0 : i32
    return %arg0, %c0_i32 : i32, i32
  }
}

</mosaic_0001>

<llo_original>
// kernel: tpu_custom_call.1
$region0: #{tpu_custom_call.1}
  #allocation0 [shape = 'u32[]', space=smem, size = 0x4, offset = 0x4, fixed_abs, tag = 'smem constant byte address 0x4 - core index']
  #allocation1 [shape = 'u32[144,128]{1,0:T(1,128)}', space=vmem, size = 0x12000, scoped, tag = 'internal scratch']
  %s0 = inlined_call_operand.vmem [shape: f32[128,16], index: 0, kind: input, shape index: {}]
  %s1 = inlined_call_operand.vmem [shape: f32[128,16], index: 1, kind: output, shape index: {}]
  %s2 = sld [smem:[#allocation0]]
  $region44: #{tpu_custom_call.1} parent=0
    _
  %s4 = ssub.s32 1, %s2
  %s5 = scalar_select 0, %s4, %s2
  loop: start=0, step=1, limit=6
  $region2: #{tpu_custom_call.1} parent=0 // loop_pre_header
    _
  $region3: #{tpu_custom_call.1} parent=0 // loop_header
    %s7 = sphi 0, %s11
    %p8 = scmp.ge.s32.totalorder %s7, 6
    %s17 = sphi 0, %s19
    %s20 = sphi 0, %s17
    %s21 = sphi 0, %s20
    %s37 = sphi 0, %s21
    %s43 = sphi 0, %s45
    %s46 = sphi 0, %s43
    %s47 = sphi 0, %s46
    %s63 = sphi 0, %s47
  $region4: #{tpu_custom_call.1} parent=0 // loop_header_branch
    %10 = sbr.rel (%p8) target = $region8
  $region5: #{tpu_custom_call.1} parent=0 // loop_body
    %s12 = ssub.s32 %s7, 1
    %s13 = ssub.s32 %s7, 2
    %s14 = sadd.s32 %s7, 1
    %s15 = ssub.s32 %s7, %s14
    %p16 = scmp.eq.s32.totalorder %s15, 0
    %s18 = sadd.s32 %s17, 1
    %s19 = scalar_select %p16, %s17, %s18
    %p22 = pneg %p16
    %p23 = scmp.eq.s32.totalorder %s7, 3
    %p24 = por %p22, %p23
    %p25 = scmp.ne.s32.totalorder %s17, %s20
    %p26 = scmp.eq.s32.totalorder %s7, 0
    %p27 = por %p25, %p26
    %p28 = scmp.ne.s32.totalorder %s17, %s20
    %p29 = scmp.eq.s32.totalorder %s12, 3
    %p30 = por %p28, %p29
    %p31 = scmp.ne.s32.totalorder %s20, %s21
    %p32 = scmp.eq.s32.totalorder %s12, 0
    %p33 = por %p31, %p32
    %p34 = scmp.ne.s32.totalorder %s20, %s21
    %p35 = scmp.eq.s32.totalorder %s13, 3
    %p36 = por %p34, %p35
    %p38 = scmp.ne.s32.totalorder %s21, %s37
    %p39 = scmp.eq.s32.totalorder %s13, 0
    %p40 = por %p38, %p39
    %s41 = ssub.s32 %s7, %s14
    %p42 = scmp.eq.s32.totalorder %s41, 0
    %s44 = sadd.s32 %s43, 1
    %s45 = scalar_select %p42, %s43, %s44
    %p48 = pneg %p42
    %p49 = scmp.eq.s32.totalorder %s7, 3
    %p50 = por %p48, %p49
    %p51 = scmp.ne.s32.totalorder %s43, %s46
    %p52 = scmp.eq.s32.totalorder %s7, 0
    %p53 = por %p51, %p52
    %p54 = scmp.ne.s32.totalorder %s43, %s46
    %p55 = scmp.eq.s32.totalorder %s12, 3
    %p56 = por %p54, %p55
    %p57 = scmp.ne.s32.totalorder %s46, %s47
    %p58 = scmp.eq.s32.totalorder %s12, 0
    %p59 = por %p57, %p58
    %p60 = scmp.ne.s32.totalorder %s46, %s47
    %p61 = scmp.eq.s32.totalorder %s13, 3
    %p62 = por %p60, %p61
    %p64 = scmp.ne.s32.totalorder %s47, %s63
    %p65 = scmp.eq.s32.totalorder %s13, 0
    %p66 = por %p64, %p65
    %p67 = scmp.le.s32.totalorder 1, %s7
    %p68 = scmp.lt.s32.totalorder %s7, 5
    %p69 = pnand %p67, %p68
    %p70 = pneg %p69
    // Predicated region
    $region9: #{tpu_custom_call.1} parent=5 // pred_check
      _
    $region10: #{tpu_custom_call.1} parent=5 // pred_check_branch
      %72 = sbr.rel (%p69) target = $region12
    $region11: #{tpu_custom_call.1} parent=5 // pred_region
      %s73 = ssub.s32 %s7, 1
    $region12: #{tpu_custom_call.1} parent=5 // pred_fallthru
      _
    %p74 = scmp.lt.s32.totalorder %s7, 4
    // Predicated region
    $region13: #{tpu_custom_call.1} parent=5 // pred_check
      %p75 = pneg %p74
    $region14: #{tpu_custom_call.1} parent=5 // pred_check_branch
      %77 = sbr.rel (%p75) target = $region16
    $region15: #{tpu_custom_call.1} parent=5 // pred_region
      // Predicated region
      $region17: #{tpu_custom_call.1} parent=15 // pred_check
        %p78 = pneg %p27
      $region18: #{tpu_custom_call.1} parent=15 // pred_check_branch
        %80 = sbr.rel (%p78) target = $region20
      $region19: #{tpu_custom_call.1} parent=15 // pred_region
        %s81 = smul.u32 4, %s7
        %p82 = scmp.lt.s32.totalorder %s81, 15
        %s83 = scalar_select %p82, %s81, 15
        %s84 = smul.addr %s83, 8
        %s85 = scalar_lea.vmem %s0, %s84
        %s86 = smul.u32 4, %s7
      $region20: #{tpu_custom_call.1} parent=15 // pred_fallthru
        _
    $region16: #{tpu_custom_call.1} parent=5 // pred_fallthru
      _
    %p87 = scmp.le.s32.totalorder 1, %s7
    %p88 = scmp.lt.s32.totalorder %s7, 5
    %p89 = pnand %p87, %p88
    %p90 = pneg %p89
    // Predicated region
    $region21: #{tpu_custom_call.1} parent=5 // pred_check
      _
    $region22: #{tpu_custom_call.1} parent=5 // pred_check_branch
      %92 = sbr.rel (%p89) target = $region24
    $region23: #{tpu_custom_call.1} parent=5 // pred_region
      %s93 = ssub.s32 %s7, 1
      %s94 = smul.u32 4, %s12
      %p95 = scmp.lt.s32.totalorder %s94, 15
      %s96 = scalar_select %p95, %s94, 15
      %s97 = smul.addr %s96, 8
      %s98 = scalar_lea.vmem %s0, %s97
      %p99 = pneg %p33
      %p100 = pneg %p30
      %p101 = pneg %p59
      %p102 = pneg %p56
      %s103 = smul.u32 4, %s12
      %p104 = scmp.lt.s32.totalorder %s103, 15
      %s105 = scalar_select %p104, %s103, 15
      %s106 = smul.addr %s105, 8
      %s107 = scalar_lea.vmem %s1, %s106
      %s108 = smul.u32 4, %s12
      %p109 = scmp.lt.s32.totalorder %s108, 15
      %s110 = scalar_select %p109, %s108, 15
      %s111 = smul.addr %s110, 8
      %s112 = scalar_lea.vmem %s0, %s111
      %s113 = smul.u32 4, %s12
      %s114 = smul.u32 4, %s12
      %p115 = scmp.lt.s32.totalorder %s114, 15
      %s116 = scalar_select %p115, %s114, 15
      %s117 = smul.addr %s116, 8
      %s118 = scalar_lea.vmem %s1, %s117
      %s119 = smul.u32 4, %s12
      %v120 = vlaneseq
      %v121 = vand.u32 %v120, 127
      %vm122 = vcmp.gt.s32.totalorder %v121, 0
      %vm123 = vcmp.lt.s32.totalorder %v121, 15
      %v124 = vlaneseq
      %v125 = vshrl.u32 %v124, 7
      %v126 = vadd.s32 %v125, 8
      %vm127 = vcmp.eq.s32.totalorder %v125, 0
      %vm128 = vcmp.eq.s32.totalorder %v126, 0
      %vm129 = vcmp.eq.s32.totalorder %v125, 15
      %vm130 = vcmp.eq.s32.totalorder %v126, 15
      loop: start=0, step=1, limit=2
      $region25: #{tpu_custom_call.1} parent=23 // loop_pre_header
        _
      $region26: #{tpu_custom_call.1} parent=23 // loop_header
        %s132 = sphi 0, %s136
        %p133 = scmp.ge.s32.totalorder %s132, 2
      $region27: #{tpu_custom_call.1} parent=23 // loop_header_branch
        %135 = sbr.rel (%p133) target = $region31
      $region28: #{tpu_custom_call.1} parent=23 // loop_body
        %s137 = smul.u32 %s132, 16
        %s138 = scalar_lea.vmem %s112, %s137
        %v139 = vld [vmem:[%s138] sm:$0xff]
        %v140 = vld [vmem:[%s138 + $0x8] sm:$0xff]
        %vm141 = vcmask 1047680
        %142 = vrot.lane.b32.xlu0 %v139, 16
        %v143 = vpop.permute.xlu0 %142
        %v144 = vsel %vm141, %v143, %v139
        %145 = vrot.lane.b32.xlu0 %v140, 16
        %v146 = vpop.permute.xlu0 %145
        %v147 = vsel %vm141, %v146, %v140
        %148 = vrot.lane.b32.xlu0 %v144, 16
        %v149 = vpop.permute.xlu0 %148
        %150 = vrot.lane.b32.xlu0 %v147, 16
        %v151 = vpop.permute.xlu0 %150
        %v152 = vsel %vm141, %v149, %v139
        %v153 = vsel %vm141, %v151, %v140
        %156 = vrot.lane.b32.xlu0 %v152, 113
        %v157 = vpop.permute.xlu0 %156
        %158 = vrot.lane.b32.xlu0 %v153, 113
        %v159 = vpop.permute.xlu0 %158
        %v162 = vsel %vm122, %v157, 0.0
        %v163 = vsel %vm122, %v159, 0.0
        %164 = vrot.lane.b32.xlu0 %v152, 127
        %v165 = vpop.permute.xlu0 %164
        %166 = vrot.lane.b32.xlu0 %v153, 127
        %v167 = vpop.permute.xlu0 %166
        %v170 = vsel %vm123, %v165, 0.0
        %v171 = vsel %vm123, %v167, 0.0
        %v172 = vadd.f32 %v139, %v139
        %v173 = vadd.f32 %v140, %v140
        %v174 = vadd.f32 %v172, %v162
        %v175 = vadd.f32 %v173, %v163
        %v176 = vadd.f32 %v174, %v170
        %v177 = vadd.f32 %v175, %v171
        %v178 = vrot.slane %v176, 7
        %v179 = vrot.slane %v177, 7
        %vm180 = vcmp.lt.s32.totalorder %v125, 1
        %v181 = vsel %vm180, %v178, %v179
        %v182 = vsel %vm180, %v179, %v178
        %v183 = vrot.slane %v176, 1
        %v184 = vrot.slane %v177, 1
        %vm185 = vcmp.lt.s32.totalorder %v125, 7
        %v186 = vsel %vm185, %v183, %v184
        %v187 = vsel %vm185, %v184, %v183
        %v188 = vsel %vm127, 0.0, %v182
        %v189 = vsel %vm128, 0.0, %v181
        %v190 = vsel %vm129, 0.0, %v186
        %v191 = vsel %vm130, 0.0, %v187
        %v192 = vadd.f32 %v176, %v176
        %v193 = vadd.f32 %v177, %v177
        %v194 = vadd.f32 %v192, %v188
        %v195 = vadd.f32 %v193, %v189
        %v196 = vadd.f32 %v194, %v190
        %v197 = vadd.f32 %v195, %v191
        %v198 = vmul.f32 %v196, 0.0625
        %v199 = vmul.f32 %v197, 0.0625
        %s200 = scalar_lea.vmem %s118, %s137
        %vm201 = vcmask 130048
        %202 = vst.msk [vmem:[%s200] sm:$0xff] %vm201, %v198
        %203 = vst.msk [vmem:[%s200 + $0x8] sm:$0xff] %vm201, %v199
      $region29: #{tpu_custom_call.1} parent=23 // loop_footer
        %s136 = sadd.s32 1, %s132
      $region30: #{tpu_custom_call.1} parent=23 // loop_footer_branch
        %131 = sbr.rel target = $region26
      $region31: #{tpu_custom_call.1} parent=23 // loop_exit
        _
      %s204 = smul.u32 4, %s12
      %p205 = scmp.lt.s32.totalorder %s204, 15
      %s206 = scalar_select %p205, %s204, 15
      %s207 = smul.addr %s206, 8
      %s208 = scalar_lea.vmem %s1, %s207
      // Predicated region
      $region32: #{tpu_custom_call.1} parent=23 // pred_check
        %p209 = pneg %p56
      $region33: #{tpu_custom_call.1} parent=23 // pred_check_branch
        %211 = sbr.rel (%p209) target = $region35
      $region34: #{tpu_custom_call.1} parent=23 // pred_region
        %s212 = smul.u32 4, %s12
      $region35: #{tpu_custom_call.1} parent=23 // pred_fallthru
        _
    $region24: #{tpu_custom_call.1} parent=5 // pred_fallthru
      _
    %p213 = scmp.le.s32.totalorder 2, %s7
    // Predicated region
    $region36: #{tpu_custom_call.1} parent=5 // pred_check
      %p214 = pneg %p213
    $region37: #{tpu_custom_call.1} parent=5 // pred_check_branch
      %216 = sbr.rel (%p214) target = $region39
    $region38: #{tpu_custom_call.1} parent=5 // pred_region
      %s217 = ssub.s32 %s7, 2
      // Predicated region
      $region40: #{tpu_custom_call.1} parent=38 // pred_check
        %p218 = pneg %p62
      $region41: #{tpu_custom_call.1} parent=38 // pred_check_branch
        %220 = sbr.rel (%p218) target = $region43
      $region42: #{tpu_custom_call.1} parent=38 // pred_region
        %s221 = smul.u32 4, %s13
        %p222 = scmp.lt.s32.totalorder %s221, 15
        %s223 = scalar_select %p222, %s221, 15
        %s224 = smul.addr %s223, 8
        %s225 = scalar_lea.vmem %s1, %s224
      $region43: #{tpu_custom_call.1} parent=38 // pred_fallthru
        _
    $region39: #{tpu_custom_call.1} parent=5 // pred_fallthru
      _
  $region6: #{tpu_custom_call.1} parent=0 // loop_footer
    %s11 = sadd.s32 1, %s7
  $region7: #{tpu_custom_call.1} parent=0 // loop_footer_branch
    %6 = sbr.rel target = $region3
  $region8: #{tpu_custom_call.1} parent=0 // loop_exit
    _

</llo_original>
